<compile_context>
chip_gen: v7x
topology: tpu7x:2x2x1
jax: 0.10.0
libtpu: 0.0.40
codegen_flags: <defaults>
</compile_context>

<pallas_src>
import functools

import jax
import jax.numpy as jnp
from jax.experimental import pallas as pl
from jax.experimental.pallas import tpu as pltpu


def _surrounding_slots_kernel(x_ref, out_ref, *, window_length, max_range):
    # x_ref   : (TB, 1)  slot indices (any numeric dtype; truncated like .long())
    # out_ref : (TB, K)  wrapped surrounding slots, K = 2*window_length + 1
    x = x_ref[...].astype(jnp.int32)                              # (TB, 1)
    offs = (jax.lax.broadcasted_iota(jnp.int32, out_ref.shape, 1)
            - jnp.int32(window_length))                           # (TB, K)
    surr = x + offs                                               # (TB, K)

    under = (surr < 0).astype(jnp.int32)
    over = (surr > max_range - 1).astype(jnp.int32)
    out = (surr * (1 - under - over)
           + under * (surr + max_range)
           + over * (surr - max_range))
    out_ref[...] = out.astype(out_ref.dtype)


def _round_up(n, m):
    return ((n + m - 1) // m) * m


def surrounding_slots_forward(x, window_length, max_range, *, block_rows=512):
    """Pallas SurroundingSlots forward. x: [N] -> [N, 2*window_length+1] int32."""
    (N,) = x.shape
    K = 2 * window_length + 1

    # Batch tile: multiple of 8 sublanes, large enough to amortize per-step
    # pipeline overhead, small enough for any generation's VMEM budget.
    TB = min(block_rows, _round_up(N, 8))
    grid = (pl.cdiv(N, TB),)

    x2 = x.reshape(N, 1)  # metadata-only reshape; keeps blocks 2-D

    kernel = functools.partial(_surrounding_slots_kernel,
                               window_length=window_length,
                               max_range=max_range)
    return pl.pallas_call(
        kernel,
        out_shape=jax.ShapeDtypeStruct((N, K), jnp.int32),
        grid_spec=pltpu.PrefetchScalarGridSpec(
            num_scalar_prefetch=0,
            grid=grid,
            in_specs=[pl.BlockSpec((TB, 1), lambda i: (i, 0))],
            out_specs=pl.BlockSpec((TB, K), lambda i: (i, 0)),
        ),
        compiler_params=pltpu.CompilerParams(
            dimension_semantics=("parallel",)),
    )(x2)


def surrounding_slots_reference(x, window_length, max_range):
    """Pure-JAX reference mirroring the PyTorch module (int32)."""
    offs = jnp.arange(-window_length, window_length + 1, dtype=jnp.int32)
    surr = x.astype(jnp.int32)[:, None] + offs[None, :]
    under = (surr < 0).astype(jnp.int32)
    over = (surr > max_range - 1).astype(jnp.int32)
    return (surr * (1 - under - over)
            + under * (surr + max_range)
            + over * (surr - max_range))


if __name__ == "__main__":
    N = 16                 # number of slot indices
    window_length = 3      # K = 2*3 + 1 = 7 surrounding slots
    max_range = 24         # e.g. hour-of-day slots

    key = jax.random.PRNGKey(0)
    x = jax.random.randint(key, (N,), minval=0, maxval=max_range,
                           dtype=jnp.int32)

    out = surrounding_slots_forward(x, window_length, max_range)
    out = jax.block_until_ready(out)

    ref = surrounding_slots_reference(x, window_length, max_range)
    assert out.shape == (N, 2 * window_length + 1)
    assert jnp.array_equal(out, ref), "mismatch vs reference"
    # every wrapped slot must land back inside [0, max_range)
    assert int(out.min()) >= 0 and int(out.max()) < max_range

    print("KERNEL_OK")
</pallas_src>

<mosaic_0001>
module attributes {stable_mosaic.version = 11 : i64} {
  func.func @_surrounding_slots_kernel(%arg0: i32, %arg1: memref<16x1xi32, #tpu.memory_space<vmem>>, %arg2: memref<16x7xi32, #tpu.memory_space<vmem>>) attributes {dimension_semantics = [#tpu.dimension_semantics<parallel>], iteration_bounds = array<i64: 1>, scalar_prefetch = 0 : i64, scratch_operands = 0 : i64, tpu.core_type = #tpu.core_type<tc>, window_params = [{transform_indices = @transform_0, window_bounds = array<i64: 16, 1>}, {transform_indices = @transform_1, window_bounds = array<i64: 16, 7>}]} {
    %c0 = arith.constant 0 : index
    %c0_0 = arith.constant 0 : index
    %0 = vector.load %arg1[%c0, %c0_0] : memref<16x1xi32, #tpu.memory_space<vmem>>, vector<16x1xi32>
    %1 = tpu.iota {dimensions = array<i32: 1>} : vector<16x7xi32>
    %c3_i32 = arith.constant 3 : i32
    %2 = vector.broadcast %c3_i32 : i32 to vector<16x7xi32>
    %3 = arith.subi %1, %2 : vector<16x7xi32>
    %4 = vector.broadcast %0 : vector<16x1xi32> to vector<16x7xi32>
    %5 = arith.addi %4, %3 : vector<16x7xi32>
    %c0_i32 = arith.constant 0 : i32
    %6 = vector.broadcast %c0_i32 : i32 to vector<16x7xi32>
    %7 = arith.cmpi slt, %5, %6 : vector<16x7xi32>
    %8 = arith.extui %7 : vector<16x7xi1> to vector<16x7xi32>
    %c23_i32 = arith.constant 23 : i32
    %9 = vector.broadcast %c23_i32 : i32 to vector<16x7xi32>
    %10 = arith.cmpi sgt, %5, %9 : vector<16x7xi32>
    %11 = arith.extui %10 : vector<16x7xi1> to vector<16x7xi32>
    %c1_i32 = arith.constant 1 : i32
    %12 = vector.broadcast %c1_i32 : i32 to vector<16x7xi32>
    %13 = arith.subi %12, %8 : vector<16x7xi32>
    %14 = arith.subi %13, %11 : vector<16x7xi32>
    %15 = arith.muli %5, %14 : vector<16x7xi32>
    %c24_i32 = arith.constant 24 : i32
    %16 = vector.broadcast %c24_i32 : i32 to vector<16x7xi32>
    %17 = arith.addi %5, %16 : vector<16x7xi32>
    %18 = arith.muli %8, %17 : vector<16x7xi32>
    %19 = arith.addi %15, %18 : vector<16x7xi32>
    %c24_i32_1 = arith.constant 24 : i32
    %20 = vector.broadcast %c24_i32_1 : i32 to vector<16x7xi32>
    %21 = arith.subi %5, %20 : vector<16x7xi32>
    %22 = arith.muli %11, %21 : vector<16x7xi32>
    %23 = arith.addi %19, %22 : vector<16x7xi32>
    %c0_2 = arith.constant 0 : index
    %c0_3 = arith.constant 0 : index
    %24 = vector.load %arg2[%c0_2, %c0_3] : memref<16x7xi32, #tpu.memory_space<vmem>>, vector<16x7xi32>
    tpu.vector_store %arg2[%c0_2, %c0_3], %23 {strides = array<i32>} : memref<16x7xi32, #tpu.memory_space<vmem>>, vector<16x7xi32>,
    return
  }
  func.func @transform_0(%arg0: i32) -> (i32, i32) {
    %c0_i32 = arith.constant 0 : i32
    %c0_i32_0 = arith.constant 0 : i32
    return %arg0, %c0_i32 : i32, i32
  }
  func.func @transform_1(%arg0: i32) -> (i32, i32) {
    %c0_i32 = arith.constant 0 : i32
    %c0_i32_0 = arith.constant 0 : i32
    return %arg0, %c0_i32 : i32, i32
  }
}

</mosaic_0001>

<llo_original>
// kernel: tpu_custom_call.1
$region0: #{tpu_custom_call.1}
  #allocation0 [shape = 'u32[]', space=smem, size = 0x4, offset = 0x4, fixed_abs, tag = 'smem constant byte address 0x4 - core index']
  #allocation1 [shape = 'u32[144,128]{1,0:T(1,128)}', space=vmem, size = 0x12000, scoped, tag = 'internal scratch']
  %s0 = inlined_call_operand.vmem [shape: s32[16,1], index: 0, kind: input, shape index: {}]
  %s1 = inlined_call_operand.vmem [shape: s32[16,7], index: 1, kind: output, shape index: {}]
  %s2 = sld [smem:[#allocation0]]
  $region14: #{tpu_custom_call.1} parent=0
    _
  %s4 = ssub.s32 1, %s2
  %s5 = scalar_select 0, %s4, %s2
  // Predicated region
  $region2: #{tpu_custom_call.1} parent=0 // pred_check
    _
  $region3: #{tpu_custom_call.1} parent=0 // pred_check_branch
    %7 = sbr.rel (0) target = $region5
  $region4: #{tpu_custom_call.1} parent=0 // pred_region
    _
  $region5: #{tpu_custom_call.1} parent=0 // pred_fallthru
    _
  %v8 = vld [vmem:[%s0] sm:$0xff]
  %v9 = vld [vmem:[%s0 + $0x8] sm:$0xff]
  %v10 = vlaneseq
  %v11 = vand.u32 %v10, 127
  %v12 = vsub.s32 %v11, 3
  %13 = vset.pattern.permute.xlu0 0
  %14 = vperm.xlu0 %13, %v8
  %v15 = vpop.permute.xlu0 %14
  %16 = vset.pattern.permute.xlu0 0
  %17 = vperm.xlu0 %16, %v9
  %v18 = vpop.permute.xlu0 %17
  %v19 = vadd.s32 %v15, %v12
  %v20 = vadd.s32 %v18, %v12
  %vm21 = vcmp.lt.s32.totalorder %v19, 0
  %vm22 = vcmp.lt.s32.totalorder %v20, 0
  %v23 = vsel %vm21, 1, 0
  %v24 = vsel %vm22, 1, 0
  %vm25 = vcmp.gt.s32.totalorder %v19, 23
  %vm26 = vcmp.gt.s32.totalorder %v20, 23
  %v27 = vsel %vm25, 1, 0
  %v28 = vsel %vm26, 1, 0
  %v29 = vsub.s32 1, %v23
  %v30 = vsub.s32 1, %v24
  %v31 = vsub.s32 %v29, %v27
  %v32 = vsub.s32 %v30, %v28
  %v33 = vmul.u32 %v19, %v31
  %v34 = vmul.u32 %v20, %v32
  %v35 = vadd.s32 %v19, 24
  %v36 = vadd.s32 %v20, 24
  %v37 = vmul.u32 %v23, %v35
  %v38 = vmul.u32 %v24, %v36
  %v39 = vadd.s32 %v33, %v37
  %v40 = vadd.s32 %v34, %v38
  %v41 = vsub.s32 %v19, 24
  %v42 = vsub.s32 %v20, 24
  %v43 = vmul.u32 %v27, %v41
  %v44 = vmul.u32 %v28, %v42
  %v45 = vadd.s32 %v39, %v43
  %v46 = vadd.s32 %v40, %v44
  %vm47 = vcmask 56320
  %48 = vst.msk [vmem:[%s1] sm:$0xff] %vm47, %v45
  %49 = vst.msk [vmem:[%s1 + $0x8] sm:$0xff] %vm47, %v46
  // Predicated region
  $region6: #{tpu_custom_call.1} parent=0 // pred_check
    _
  $region7: #{tpu_custom_call.1} parent=0 // pred_check_branch
    %51 = sbr.rel (0) target = $region9
  $region8: #{tpu_custom_call.1} parent=0 // pred_region
    _
  $region9: #{tpu_custom_call.1} parent=0 // pred_fallthru
    _
  // Predicated region
  $region10: #{tpu_custom_call.1} parent=0 // pred_check
    _
  $region11: #{tpu_custom_call.1} parent=0 // pred_check_branch
    %53 = sbr.rel (0) target = $region13
  $region12: #{tpu_custom_call.1} parent=0 // pred_region
    _
  $region13: #{tpu_custom_call.1} parent=0 // pred_fallthru
    _

</llo_original>
